<compile_context>
chip_gen: v5e
topology: v5e:2x2
jax: 0.10.0
libtpu: 0.0.40
codegen_flags: <defaults>
</compile_context>

<pallas_src>
from functools import partial

import numpy as np
import jax
import jax.numpy as jnp
from jax.experimental import pallas as pl
from jax.experimental.pallas import tpu as pltpu


# ------------------------------ small helpers ------------------------------ #
def _round_up(n, m):
    return -(-n // m) * m


def _cdiv(a, b):
    return -(-a // b)


def _sublane(dtype):
    # dtype-aware sublane alignment: 8 rows for f32, 16 for bf16, 32 for int8/fp8.
    return {4: 8, 2: 16, 1: 32}.get(jnp.dtype(dtype).itemsize, 8)


# -------------- pl.Buffered(1) support probe (runs once, eagerly) ----------- #
_BUFFERED1_OK = None


def _buffered1_supported():
    """Constant-index weight blocks only need ONE VMEM buffer, but the default
    pipeline allocates two.  Probe pl.Buffered(1) once (eagerly, outside jit)
    so we can halve the resident-weight footprint where supported and fall
    back cleanly otherwise."""
    global _BUFFERED1_OK
    if _BUFFERED1_OK is None:
        try:
            def _k(x_ref, o_ref):
                o_ref[...] = x_ref[...] + 1.0

            x = jnp.zeros((8, 128), jnp.float32)
            out = pl.pallas_call(
                _k,
                out_shape=jax.ShapeDtypeStruct((8, 128), jnp.float32),
                grid=(1,),
                in_specs=[pl.BlockSpec((8, 128), lambda i: (0, 0),
                                       pipeline_mode=pl.Buffered(1))],
                out_specs=pl.BlockSpec((8, 128), lambda i: (0, 0)),
            )(x)
            _BUFFERED1_OK = bool(jnp.allclose(out, 1.0))
        except Exception:
            _BUFFERED1_OK = False
    return _BUFFERED1_OK


# ------------------------------ fused kernel ------------------------------- #
def _make_fused_mlp_kernel(n_layers, use_mask, final_relu):
    """x -> [Linear+ReLU]*(n-1) -> (mask?) -> Linear(+ReLU?) on one batch tile.

    MXU matmuls take the native (f32/bf16) LHS/RHS with an f32 accumulator;
    bias add / ReLU / mask multiply stay in f32 (v5e-safe) and the activation
    is downcast only as the next layer's LHS."""

    def kernel(*refs):
        idx = 0
        x_ref = refs[idx]; idx += 1
        m_ref = None
        if use_mask:
            m_ref = refs[idx]; idx += 1
        wb = refs[idx: idx + 2 * n_layers]
        o_ref = refs[-1]

        lhs_dtype = x_ref.dtype
        x = x_ref[...]                        # native dtype straight into the MXU
        if use_mask and n_layers == 1:        # mask feeds the only Linear directly
            x = (x.astype(jnp.float32) * m_ref[...].astype(jnp.float32)
                 ).astype(lhs_dtype)
        for li in range(n_layers):
            w = wb[2 * li][...]
            b = wb[2 * li + 1][...]
            acc = jnp.dot(x, w, preferred_element_type=jnp.float32)
            acc = acc + b.astype(jnp.float32)
            if li < n_layers - 1 or final_relu:
                acc = jnp.maximum(acc, 0.0)
            if use_mask and li == n_layers - 2:
                # feature mask fused right before the final Linear (free VPU
                # slack next to the MXU op; do not hoist to the wrapper).
                acc = acc * m_ref[...].astype(jnp.float32)
            x = acc.astype(lhs_dtype) if li < n_layers - 1 else acc
        o_ref[...] = x.astype(o_ref.dtype)

    return kernel


def fused_mlp(x2d, layer_params, feature_mask=None, *, final_relu=False,
              block_rows=None, buffered_weights=False):
    """Run a chain of Linear(+ReLU) layers over x2d in ONE pallas_call.

    layer_params : list of (w: (Din_i, Dout_i), b: (Dout_i,)); Din_0 must equal
                   x2d.shape[1] and Din_{i+1} == Dout_i.  All layers but the
                   last are Linear+ReLU; the last is Linear (+ReLU iff
                   final_relu).
    feature_mask : optional (D,), (1, D) or (B, D) mask multiplied into the
                   activation right before the LAST layer.
    """
    B, Din = x2d.shape
    n_layers = len(layer_params)
    assert n_layers >= 1
    Dout = layer_params[-1][0].shape[1]
    dtype = x2d.dtype
    itemsize = jnp.dtype(dtype).itemsize
    sub = _sublane(dtype)

    # ---- batch tiling -------------------------------------------------------
    # Big tiles amortize the ~0.35us per-grid-step overhead (cap 512 rows) and
    # TB = round_up(ceil(B/2)) gives >= 2 grid steps whenever B > sublane so
    # the "parallel" batch axis can shard across v7x's two TensorCores.
    # Ragged final tiles use Pallas' clipped block DMA: no wrapper-side batch
    # pad / output copy-slice for large B.
    if block_rows is not None:
        TB = _round_up(block_rows, sub)
    else:
        TB = min(512, max(sub, _round_up(_cdiv(B, 2), sub)))
    Bp = B
    if B < sub:  # degenerate tiny batch: pad a handful of rows (negligible)
        Bp = sub
        x2d = jnp.pad(x2d, ((0, Bp - B), (0, 0)))
    n_blocks = _cdiv(Bp, TB)

    inputs = [x2d]
    in_specs = [pl.BlockSpec((TB, Din), lambda i: (i, 0))]

    use_mask = feature_mask is not None
    mask_bytes = 0
    if use_mask:
        m = jnp.asarray(feature_mask, dtype=dtype)
        if m.ndim == 1:
            m = m[None, :]
        if m.ndim != 2 or m.shape[0] not in (1, B):
            raise ValueError(
                f"feature_mask must be (D,), (1, D) or (batch, D); got {m.shape}")
        if m.shape[0] == 1:
            inputs.append(m)
            in_specs.append(pl.BlockSpec((1, m.shape[1]), lambda i: (0, 0)))
        else:
            if Bp != B:
                m = jnp.pad(m, ((0, Bp - B), (0, 0)))
            inputs.append(m)
            in_specs.append(pl.BlockSpec((TB, m.shape[1]), lambda i: (i, 0)))
        mask_bytes = 2 * TB * m.shape[1] * itemsize

    # ---- weights/biases: grid-resident VMEM blocks --------------------------
    # Constant index_map => fetched once and kept resident; pl.Buffered(1)
    # (when supported) drops the pipeline's second buffer for them.
    wmode = pl.Buffered(1) if buffered_weights else None
    w_bytes = 0
    for w, b in layer_params:
        din, dout = w.shape
        b2 = jnp.asarray(b).reshape(1, dout)
        inputs += [w, b2]
        if wmode is not None:
            in_specs += [
                pl.BlockSpec((din, dout), lambda i: (0, 0), pipeline_mode=wmode),
                pl.BlockSpec((1, dout), lambda i: (0, 0), pipeline_mode=wmode),
            ]
        else:
            in_specs += [pl.BlockSpec((din, dout), lambda i: (0, 0)),
                         pl.BlockSpec((1, dout), lambda i: (0, 0))]
        w_bytes += (din * dout + dout) * jnp.dtype(w.dtype).itemsize

    # ---- explicit VMEM budget & cost estimate --------------------------------
    # TODO(synk): if the resident-weight footprint approaches ~32 MiB (half of
    # v7x's 64 MiB/TC), switch to streaming weight tiles over a second
    # 'arbitrary' grid axis (or pltpu.emit_pipeline) instead of full residency.
    w_bufs = 1 if wmode is not None else 2
    max_width = max(w.shape[1] for w, _ in layer_params)
    need = (w_bufs * w_bytes                 # resident weights/biases
            + 2 * TB * Din * itemsize        # double-buffered input tile
            + 2 * TB * Dout * itemsize       # double-buffered output tile
            + 2 * TB * max_width * 4         # live f32 activations
            + mask_bytes)
    # Cap at 64 MiB so the same budget also fits v7x's physical VMEM.
    vmem_limit = int(min(64 << 20, max(32 << 20, 2 * need)))

    flops = 2 * B * sum(w.shape[0] * w.shape[1] for w, _ in layer_params)
    bytes_accessed = B * Din * itemsize + w_bytes + B * Dout * itemsize
    cost = pl.CostEstimate(flops=flops, transcendentals=0,
                           bytes_accessed=bytes_accessed)

    out = pl.pallas_call(
        _make_fused_mlp_kernel(n_layers, use_mask, final_relu),
        out_shape=jax.ShapeDtypeStruct((Bp, Dout), dtype),
        grid=(n_blocks,),
        in_specs=in_specs,
        out_specs=pl.BlockSpec((TB, Dout), lambda i: (i, 0)),
        compiler_params=pltpu.CompilerParams(
            dimension_semantics=("parallel",),   # megacore shard on v7x
            vmem_limit_bytes=vmem_limit,
        ),
        cost_estimate=cost,
    )(*inputs)
    return out[:B] if Bp != B else out


# --------------------- lane-dense (128-padded) packing ---------------------- #
def _pad_feature_dims(x2d, layer_params, feature_mask):
    """Zero-pad every layer's out-features (and subsequent in-features) up to
    128-lane multiples so weight / activation / output blocks are lane-dense
    (unmasked vld/vst).  Zero padding leaves the numerics untouched; the
    wrapper slices the extra output columns back off.
    NOTE(synk): for large networks, pre-pad the parameters once at init
    instead of per call (here the pads are tiny and fused by jit)."""
    padded = []
    prev_p = x2d.shape[1]                 # chain's first Din == activation width
    for w, b in layer_params:
        din, dout = w.shape
        dout_p = _round_up(dout, 128)
        w_p = jnp.pad(w, ((0, prev_p - din), (0, dout_p - dout)))
        b_p = jnp.pad(jnp.asarray(b).reshape(-1), (0, dout_p - dout))
        padded.append((w_p, b_p))
        prev_p = dout_p
    mask_p = None
    if feature_mask is not None:
        m = jnp.asarray(feature_mask)
        if m.ndim == 1:
            m = m[None, :]
        target = padded[-1][0].shape[0]   # (padded) in-features of the last layer
        mask_p = jnp.pad(m, ((0, 0), (0, target - m.shape[1])))
    return padded, mask_p


@partial(jax.jit, static_argnames=("final_relu", "out_dim", "buffered_weights"))
def _forward_impl(x, layer_params, feature_mask, *, final_relu, out_dim,
                  buffered_weights):
    x2d = x.reshape(x.shape[0], -1)                        # nn.Flatten
    padded, mask_p = _pad_feature_dims(x2d, layer_params, feature_mask)
    out = fused_mlp(x2d, padded, mask_p, final_relu=final_relu,
                    buffered_weights=buffered_weights)
    return out[:, :out_dim] if out.shape[1] != out_dim else out


# --------------------------- FullyConnected model --------------------------- #
class FullyConnectedPallas:
    """JAX/Pallas port of models/fully_connected.py::FullyConnected."""

    def __init__(self, input_size, layout, key):
        self.input_size = input_size
        self.layout = list(layout)
        self.n_hidden = len(layout) - 1
        self.params = []
        prev = input_size
        for fc_size in layout:
            key, kw, kb = jax.random.split(key, 3)
            bound = 1.0 / np.sqrt(prev)
            # stored as (in, out) == W.T relative to nn.Linear's (out, in)
            w = jax.random.uniform(kw, (prev, fc_size), jnp.float32, -bound, bound)
            b = jax.random.uniform(kb, (fc_size,), jnp.float32, -bound, bound)
            self.params.append((w, b))
            prev = fc_size

    def _applied_hidden(self):
        # Hidden LinReLU blocks the reference forward actually applies
        # (the last LinReLU is constructed but skipped, as in the spec).
        return self.params[: self.n_hidden - 1]

    def _check_chain(self):
        applied = self._applied_hidden()
        feat_dim = applied[-1][0].shape[1] if applied else self.input_size
        final_in = self.params[-1][0].shape[0]
        if final_in != feat_dim:
            raise ValueError(
                "FullyConnected.forward skips the last hidden LinReLU (faithful "
                f"to the reference); the final Linear expects {final_in} input "
                f"features but receives {feat_dim}. Use a layout whose last two "
                "hidden sizes are equal.")

    def __call__(self, x, feature_mask=None):
        self._check_chain()
        layer_params = list(self._applied_hidden()) + [self.params[-1]]
        return _forward_impl(
            x, layer_params, feature_mask, final_relu=False,
            out_dim=self.layout[-1], buffered_weights=_buffered1_supported())

    def extract_feature(self, x):
        hidden = list(self._applied_hidden())
        if not hidden:
            return x.reshape(x.shape[0], -1)
        return _forward_impl(
            x, hidden, None, final_relu=True,
            out_dim=hidden[-1][0].shape[1],
            buffered_weights=_buffered1_supported())


# ------------------------------ reference (numpy) --------------------------- #
def _reference_features(model, x):
    x = np.asarray(x).reshape(x.shape[0], -1).astype(np.float32)
    for i in range(1, model.n_hidden):
        w, b = model.params[i - 1]
        x = np.maximum(x @ np.asarray(w) + np.asarray(b), 0.0)
    return x


def _reference(model, x, feature_mask):
    x = _reference_features(model, x)
    if feature_mask is not None:
        fm = np.asarray(feature_mask, dtype=np.float32)
        if fm.ndim == 1:
            fm = fm[None, :]
        x = x * fm
    w, b = model.params[-1]
    return x @ np.asarray(w) + np.asarray(b)


if __name__ == "__main__":
    key = jax.random.PRNGKey(0)
    kx, kp, km, kx2, km2 = jax.random.split(key, 5)

    B, C, H, W = 2, 4, 4, 4
    input_size = C * H * W          # 64
    layout = [32, 32, 8]            # last two hidden sizes equal (see header NOTE)

    x = jax.random.normal(kx, (B, C, H, W), jnp.float32)
    model = FullyConnectedPallas(input_size, layout, kp)
    feature_mask = (jax.random.uniform(km, (layout[0],)) > 0.5).astype(jnp.float32)

    out = model(x)
    out_masked = model(x, feature_mask=feature_mask)
    feats = model.extract_feature(x)
    jax.block_until_ready((out, out_masked, feats))

    assert out.shape == (B, layout[-1])
    assert feats.shape == (B, layout[0])
    assert np.allclose(np.asarray(out), _reference(model, x, None), atol=1e-4)
    assert np.allclose(np.asarray(out_masked), _reference(model, x, feature_mask),
                       atol=1e-4)
    assert np.allclose(np.asarray(feats), _reference_features(model, x), atol=1e-4)

    # Second case: multi-step grid (2 blocks, ragged final tile) + per-row mask.
    B2 = 20
    x_big = jax.random.normal(kx2, (B2, C, H, W), jnp.float32)
    mask_rows = (jax.random.uniform(km2, (B2, layout[0])) > 0.5).astype(jnp.float32)
    out_big = model(x_big, feature_mask=mask_rows)
    jax.block_until_ready(out_big)
    assert out_big.shape == (B2, layout[-1])
    assert np.allclose(np.asarray(out_big), _reference(model, x_big, mask_rows),
                       atol=1e-4)

    print("KERNEL_OK")
</pallas_src>

<mosaic_0001>
module attributes {stable_mosaic.version = 11 : i64} {
  func.func @_k(%arg0: i32, %arg1: memref<8x128xf32, #tpu.memory_space<vmem>>, %arg2: memref<8x128xf32, #tpu.memory_space<vmem>>) attributes {dimension_semantics = [#tpu.dimension_semantics<arbitrary>], iteration_bounds = array<i64: 1>, scalar_prefetch = 0 : i64, scratch_operands = 0 : i64, tpu.core_type = #tpu.core_type<tc>, window_params = [{pipeline_mode = #tpu.pipeline_mode<synchronous>, transform_indices = @transform_0, window_bounds = array<i64: 8, 128>}, {pipeline_mode = #tpu.pipeline_mode<synchronous>, transform_indices = @transform_1, window_bounds = array<i64: 8, 128>}]} {
    %c0 = arith.constant 0 : index
    %c0_0 = arith.constant 0 : index
    %0 = vector.load %arg1[%c0, %c0_0] : memref<8x128xf32, #tpu.memory_space<vmem>>, vector<8x128xf32>
    %cst = arith.constant 1.000000e+00 : f32
    %1 = vector.broadcast %cst : f32 to vector<8x128xf32>
    %2 = arith.addf %0, %1 : vector<8x128xf32>
    %c0_1 = arith.constant 0 : index
    %c0_2 = arith.constant 0 : index
    %3 = vector.load %arg2[%c0_1, %c0_2] : memref<8x128xf32, #tpu.memory_space<vmem>>, vector<8x128xf32>
    tpu.vector_store %arg2[%c0_1, %c0_2], %2 {strides = array<i32>} : memref<8x128xf32, #tpu.memory_space<vmem>>, vector<8x128xf32>,
    return
  }
  func.func @transform_0(%arg0: i32) -> (i32, i32) {
    %c0_i32 = arith.constant 0 : i32
    %c0_i32_0 = arith.constant 0 : i32
    %c0_i32_1 = arith.constant 0 : i32
    return %c0_i32, %c0_i32_0 : i32, i32
  }
  func.func @transform_1(%arg0: i32) -> (i32, i32) {
    %c0_i32 = arith.constant 0 : i32
    %c0_i32_0 = arith.constant 0 : i32
    %c0_i32_1 = arith.constant 0 : i32
    return %c0_i32, %c0_i32_0 : i32, i32
  }
}

module attributes {stable_mosaic.version = 11 : i64} {
  func.func @kernel(%arg0: i32, %arg1: memref<8x64xf32, #tpu.memory_space<vmem>>, %arg2: memref<64x128xf32, #tpu.memory_space<vmem>>, %arg3: memref<1x128xf32, #tpu.memory_space<vmem>>, %arg4: memref<128x128xf32, #tpu.memory_space<vmem>>, %arg5: memref<1x128xf32, #tpu.memory_space<vmem>>, %arg6: memref<8x128xf32, #tpu.memory_space<vmem>>) attributes {dimension_semantics = [#tpu.dimension_semantics<parallel>], iteration_bounds = array<i64: 1>, scalar_prefetch = 0 : i64, scratch_operands = 0 : i64, tpu.core_type = #tpu.core_type<tc>, window_params = [{transform_indices = @transform_0, window_bounds = array<i64: 8, 64>}, {pipeline_mode = #tpu.pipeline_mode<synchronous>, transform_indices = @transform_1, window_bounds = array<i64: 64, 128>}, {pipeline_mode = #tpu.pipeline_mode<synchronous>, transform_indices = @transform_2, window_bounds = array<i64: 1, 128>}, {pipeline_mode = #tpu.pipeline_mode<synchronous>, transform_indices = @transform_3, window_bounds = array<i64: 128, 128>}, {pipeline_mode = #tpu.pipeline_mode<synchronous>, transform_indices = @transform_4, window_bounds = array<i64: 1, 128>}, {transform_indices = @transform_5, window_bounds = array<i64: 8, 128>}]} {
    %c0 = arith.constant 0 : index
    %c0_0 = arith.constant 0 : index
    %0 = vector.load %arg1[%c0, %c0_0] : memref<8x64xf32, #tpu.memory_space<vmem>>, vector<8x64xf32>
    %c0_1 = arith.constant 0 : index
    %c0_2 = arith.constant 0 : index
    %1 = vector.load %arg2[%c0_1, %c0_2] : memref<64x128xf32, #tpu.memory_space<vmem>>, vector<64x128xf32>
    %c0_3 = arith.constant 0 : index
    %c0_4 = arith.constant 0 : index
    %2 = vector.load %arg3[%c0_3, %c0_4] : memref<1x128xf32, #tpu.memory_space<vmem>>, vector<1x128xf32>
    %cst = arith.constant dense<0.000000e+00> : vector<8x128xf32>
    %3 = tpu.matmul %0, %1, %cst {dimension_numbers = #tpu.dot_dimension_numbers<[1], [0], [0], [1], [0, 0, 1, 1], [], []>} : vector<8x64xf32>, vector<64x128xf32>, vector<8x128xf32> -> vector<8x128xf32>
    %4 = vector.broadcast %2 : vector<1x128xf32> to vector<8x128xf32>
    %5 = arith.addf %3, %4 : vector<8x128xf32>
    %cst_5 = arith.constant 0.000000e+00 : f32
    %6 = vector.broadcast %cst_5 : f32 to vector<8x128xf32>
    %7 = arith.maximumf %5, %6 : vector<8x128xf32>
    %c0_6 = arith.constant 0 : index
    %c0_7 = arith.constant 0 : index
    %8 = vector.load %arg4[%c0_6, %c0_7] : memref<128x128xf32, #tpu.memory_space<vmem>>, vector<128x128xf32>
    %c0_8 = arith.constant 0 : index
    %c0_9 = arith.constant 0 : index
    %9 = vector.load %arg5[%c0_8, %c0_9] : memref<1x128xf32, #tpu.memory_space<vmem>>, vector<1x128xf32>
    %cst_10 = arith.constant dense<0.000000e+00> : vector<8x128xf32>
    %10 = tpu.matmul %7, %8, %cst_10 {dimension_numbers = #tpu.dot_dimension_numbers<[1], [0], [0], [1], [0, 0, 1, 1], [], []>} : vector<8x128xf32>, vector<128x128xf32>, vector<8x128xf32> -> vector<8x128xf32>
    %11 = vector.broadcast %9 : vector<1x128xf32> to vector<8x128xf32>
    %12 = arith.addf %10, %11 : vector<8x128xf32>
    %c0_11 = arith.constant 0 : index
    %c0_12 = arith.constant 0 : index
    %13 = vector.load %arg6[%c0_11, %c0_12] : memref<8x128xf32, #tpu.memory_space<vmem>>, vector<8x128xf32>
    tpu.vector_store %arg6[%c0_11, %c0_12], %12 {strides = array<i32>} : memref<8x128xf32, #tpu.memory_space<vmem>>, vector<8x128xf32>,
    return
  }
  func.func @transform_0(%arg0: i32) -> (i32, i32) {
    %c0_i32 = arith.constant 0 : i32
    %c0_i32_0 = arith.constant 0 : i32
    return %arg0, %c0_i32 : i32, i32
  }
  func.func @transform_1(%arg0: i32) -> (i32, i32) {
    %c0_i32 = arith.constant 0 : i32
    %c0_i32_0 = arith.constant 0 : i32
    %c0_i32_1 = arith.constant 0 : i32
    return %c0_i32, %c0_i32_0 : i32, i32
  }
  func.func @transform_2(%arg0: i32) -> (i32, i32) {
    %c0_i32 = arith.constant 0 : i32
    %c0_i32_0 = arith.constant 0 : i32
    %c0_i32_1 = arith.constant 0 : i32
    return %c0_i32, %c0_i32_0 : i32, i32
  }
  func.func @transform_3(%arg0: i32) -> (i32, i32) {
    %c0_i32 = arith.constant 0 : i32
    %c0_i32_0 = arith.constant 0 : i32
    %c0_i32_1 = arith.constant 0 : i32
    return %c0_i32, %c0_i32_0 : i32, i32
  }
  func.func @transform_4(%arg0: i32) -> (i32, i32) {
    %c0_i32 = arith.constant 0 : i32
    %c0_i32_0 = arith.constant 0 : i32
    %c0_i32_1 = arith.constant 0 : i32
    return %c0_i32, %c0_i32_0 : i32, i32
  }
  func.func @transform_5(%arg0: i32) -> (i32, i32) {
    %c0_i32 = arith.constant 0 : i32
    %c0_i32_0 = arith.constant 0 : i32
    return %arg0, %c0_i32 : i32, i32
  }
}

</mosaic_0001>

<llo_original>
// kernel: tpu_custom_call.1
$region0: #{tpu_custom_call.1}
  #allocation0 [shape = 'u32[]', space=smem, size = 0x4, offset = 0x4, fixed_abs, tag = 'smem constant byte address 0x4 - core index']
  #allocation1 [shape = 'u32[72,128]{1,0:T(1,128)}', space=vmem, size = 0x9000, scoped, tag = 'internal scratch']
  %s0 = inlined_call_operand.hbm [shape: f32[8,128], index: 0, kind: input, shape index: {}]
  %s1 = inlined_call_operand.hbm [shape: f32[8,128], index: 1, kind: output, shape index: {}]
  %s2 = sld [smem:[#allocation0]]
  $region18: #{tpu_custom_call.1} parent=0
    _
  %s4 = ssub.s32 1, %s2
  %s5 = scalar_select 0, %s4, %s2
  $region1: #{tpu_custom_call.1} parent=0
    #allocation2 [shape = 'u8[4096]{0}', space=vmem, size = 0x1000, scoped, tag = 'input window, operand 0, single buffered']
    #allocation3 [shape = 's32[1]{0}', space=sflag, size = 0x4, scoped, tag = 'scoped memory for tpu_custom_call.1']
    #allocation4 [shape = 's32[1]{0}', space=sflag, size = 0x4, scoped, tag = 'scoped memory for tpu_custom_call.1']
    #allocation5 [shape = 'u8[4096]{0}', space=vmem, size = 0x1000, scoped, tag = 'output window, operand 0, single buffered']
    %6 = vsyncpa [#allocation3], 0
    %7 = vsyncpa [#allocation4], 0
    // Predicated region
    $region2: #{tpu_custom_call.1} parent=1 // pred_check
      _
    $region3: #{tpu_custom_call.1} parent=1 // pred_check_branch
      %9 = sbr.rel (0) target = $region5
    $region4: #{tpu_custom_call.1} parent=1 // pred_region
      %11 = vsyncadd [#allocation3], 0
      %s13 = sshll.u32 %s0, 4
      %s14 = int_to_ptr.hbm [resolvable:$true] %s13
      %s15 = sshll.u32 [#allocation2], 4
      %s16 = int_to_ptr.vmem [resolvable:$true] %s15
      %18 = dma.hbm_to_vmem [thread:$0]  %s14, 128, %s16, [#allocation3]
    $region5: #{tpu_custom_call.1} parent=1 // pred_fallthru
      _
    // Predicated region
    $region6: #{tpu_custom_call.1} parent=1 // pred_check
      _
    $region7: #{tpu_custom_call.1} parent=1 // pred_check_branch
      %20 = sbr.rel (0) target = $region9
    $region8: #{tpu_custom_call.1} parent=1 // pred_region
      %22 = dma.done [#allocation3], 128
    $region9: #{tpu_custom_call.1} parent=1 // pred_fallthru
      _
    %v23 = vld [vmem:[#allocation2] sm:$0xff]
    %v24 = vadd.f32 %v23, 1.0
    %25 = vst [vmem:[#allocation5] sm:$0xff] %v24
    // Predicated region
    $region10: #{tpu_custom_call.1} parent=1 // pred_check
      _
    $region11: #{tpu_custom_call.1} parent=1 // pred_check_branch
      %27 = sbr.rel (0) target = $region13
    $region12: #{tpu_custom_call.1} parent=1 // pred_region
      %29 = vsyncadd [#allocation4], 0
      %s31 = sshll.u32 [#allocation5], 4
      %s32 = int_to_ptr.vmem [resolvable:$true] %s31
      %s33 = sshll.u32 %s1, 4
      %s34 = int_to_ptr.hbm [resolvable:$true] %s33
      %36 = dma.vmem_to_hbm [thread:$0]  %s32, 128, %s34, [#allocation4]
    $region13: #{tpu_custom_call.1} parent=1 // pred_fallthru
      _
    // Predicated region
    $region14: #{tpu_custom_call.1} parent=1 // pred_check
      _
    $region15: #{tpu_custom_call.1} parent=1 // pred_check_branch
      %38 = sbr.rel (0) target = $region17
    $region16: #{tpu_custom_call.1} parent=1 // pred_region
      %40 = dma.done [#allocation4], 128
    $region17: #{tpu_custom_call.1} parent=1 // pred_fallthru
      _
    %41 = vsyncpa [#allocation3], 1
    %42 = vsyncpa [#allocation4], 1

// kernel: _forward_impl.1
$region0: #{_forward_impl.1}
  #allocation0 [shape = 'u32[]', space=smem, size = 0x4, offset = 0x4, fixed_abs, tag = 'smem constant byte address 0x4 - core index']
  #allocation1 [shape = 'u32[72,128]{1,0:T(1,128)}', space=vmem, size = 0x9000, scoped, tag = 'internal scratch']
  %s0 = inlined_call_operand.vmem [shape: f32[8,64], index: 0, kind: input, shape index: {}]
  %s1 = inlined_call_operand.vmem [shape: f32[64,128], index: 1, kind: input, shape index: {}]
  %s2 = inlined_call_operand.vmem [shape: f32[1,128], index: 2, kind: input, shape index: {}]
  %s3 = inlined_call_operand.vmem [shape: f32[128,128], index: 3, kind: input, shape index: {}]
  %s4 = inlined_call_operand.vmem [shape: f32[1,128], index: 4, kind: input, shape index: {}]
  %s5 = inlined_call_operand.vmem [shape: f32[8,128], index: 5, kind: output, shape index: {}]
  %s6 = sld [smem:[#allocation0]]
  $region30: #{_forward_impl.1} parent=0
    _
  %s8 = ssub.s32 1, %s6
  %s9 = scalar_select 0, %s8, %s6
  // Predicated region
  $region2: #{_forward_impl.1} parent=0 // pred_check
    _
  $region3: #{_forward_impl.1} parent=0 // pred_check_branch
    %11 = sbr.rel (0) target = $region5
  $region4: #{_forward_impl.1} parent=0 // pred_region
    _
  $region5: #{_forward_impl.1} parent=0 // pred_fallthru
    _
  // Predicated region
  $region6: #{_forward_impl.1} parent=0 // pred_check
    _
  $region7: #{_forward_impl.1} parent=0 // pred_check_branch
    %13 = sbr.rel (0) target = $region9
  $region8: #{_forward_impl.1} parent=0 // pred_region
    _
  $region9: #{_forward_impl.1} parent=0 // pred_fallthru
    _
  // Predicated region
  $region10: #{_forward_impl.1} parent=0 // pred_check
    _
  $region11: #{_forward_impl.1} parent=0 // pred_check_branch
    %15 = sbr.rel (0) target = $region13
  $region12: #{_forward_impl.1} parent=0 // pred_region
    _
  $region13: #{_forward_impl.1} parent=0 // pred_fallthru
    _
  // Predicated region
  $region14: #{_forward_impl.1} parent=0 // pred_check
    _
  $region15: #{_forward_impl.1} parent=0 // pred_check_branch
    %17 = sbr.rel (0) target = $region17
  $region16: #{_forward_impl.1} parent=0 // pred_region
    _
  $region17: #{_forward_impl.1} parent=0 // pred_fallthru
    _
  // Predicated region
  $region18: #{_forward_impl.1} parent=0 // pred_check
    _
  $region19: #{_forward_impl.1} parent=0 // pred_check_branch
    %19 = sbr.rel (0) target = $region21
  $region20: #{_forward_impl.1} parent=0 // pred_region
    _
  $region21: #{_forward_impl.1} parent=0 // pred_fallthru
    _
  %v20 = vld [vmem:[%s0] sm:$0xff]
  %v21 = vld [vmem:[%s1] sm:$0xff]
  %v22 = vld [vmem:[%s1 + $0x8] sm:$0xff]
  %v23 = vld [vmem:[%s1 + $0x10] sm:$0xff]
  %v24 = vld [vmem:[%s1 + $0x18] sm:$0xff]
  %v25 = vld [vmem:[%s1 + $0x20] sm:$0xff]
  %v26 = vld [vmem:[%s1 + $0x28] sm:$0xff]
  %v27 = vld [vmem:[%s1 + $0x30] sm:$0xff]
  %v28 = vld [vmem:[%s1 + $0x38] sm:$0xff]
  %v29 = vld [vmem:[%s2] sm:$0x1]
  %v31 = vperm.slane %v29, 0
  %vm33 = vcmask 523264
  %v35 = vsel %vm33, %v20, 0
  %37 = vmatpush.msra.mxu0 0.0
  %38 = vmatpush.msra.mxu0 0.0
  %39 = vmatpush.msra.mxu0 0.0
  %40 = vmatpush.msra.mxu0 0.0
  %41 = vmatpush.msra.mxu0 0.0
  %42 = vmatpush.msra.mxu0 0.0
  %43 = vmatpush.msra.mxu0 0.0
  %44 = vmatpush.msra.mxu0 0.0
  %45 = vmatpush.msra.mxu0 %v28
  %46 = vmatpush.msra.mxu0 %v27
  %47 = vmatpush.msra.mxu0 %v26
  %48 = vmatpush.msra.mxu0 %v25
  %49 = vmatpush.msra.mxu0 %v24
  %50 = vmatpush.msra.mxu0 %v23
  %51 = vmatpush.msra.mxu0 %v22
  %52 = vmatpush.msra.mxu0 %v21
  %53 = vmatmul.f32.gmra.mxu0 %v35
  %v54 = vpop.f32.mrf.mxu0
  %v55 = vadd.f32 %v31, %v54
  %56 = vdwg.mxu0
  %v57 = vmax.f32 %v55, 0.0
  %v58 = vld [vmem:[%s3] sm:$0xff]
  %v59 = vld [vmem:[%s3 + $0x8] sm:$0xff]
  %v60 = vld [vmem:[%s3 + $0x10] sm:$0xff]
  %v61 = vld [vmem:[%s3 + $0x18] sm:$0xff]
  %v62 = vld [vmem:[%s3 + $0x20] sm:$0xff]
  %v63 = vld [vmem:[%s3 + $0x28] sm:$0xff]
  %v64 = vld [vmem:[%s3 + $0x30] sm:$0xff]
  %v65 = vld [vmem:[%s3 + $0x38] sm:$0xff]
  %v66 = vld [vmem:[%s3 + $0x40] sm:$0xff]
  %v67 = vld [vmem:[%s3 + $0x48] sm:$0xff]
  %v68 = vld [vmem:[%s3 + $0x50] sm:$0xff]
  %v69 = vld [vmem:[%s3 + $0x58] sm:$0xff]
  %v70 = vld [vmem:[%s3 + $0x60] sm:$0xff]
  %v71 = vld [vmem:[%s3 + $0x68] sm:$0xff]
  %v72 = vld [vmem:[%s3 + $0x70] sm:$0xff]
  %v73 = vld [vmem:[%s3 + $0x78] sm:$0xff]
  %v74 = vld [vmem:[%s4] sm:$0x1]
  %v76 = vperm.slane %v74, 0
  %78 = vmatpush.msra.mxu0 %v73
  %79 = vmatpush.msra.mxu0 %v72
  %80 = vmatpush.msra.mxu0 %v71
  %81 = vmatpush.msra.mxu0 %v70
  %82 = vmatpush.msra.mxu0 %v69
  %83 = vmatpush.msra.mxu0 %v68
  %84 = vmatpush.msra.mxu0 %v67
  %85 = vmatpush.msra.mxu0 %v66
  %86 = vmatpush.msra.mxu0 %v65
  %87 = vmatpush.msra.mxu0 %v64
  %88 = vmatpush.msra.mxu0 %v63
  %89 = vmatpush.msra.mxu0 %v62
  %90 = vmatpush.msra.mxu0 %v61
  %91 = vmatpush.msra.mxu0 %v60
  %92 = vmatpush.msra.mxu0 %v59
  %93 = vmatpush.msra.mxu0 %v58
  %94 = vmatmul.f32.gmra.mxu0 %v57
  %v95 = vpop.f32.mrf.mxu0
  %v96 = vadd.f32 %v76, %v95
  %97 = vdwg.mxu0
  %98 = vst [vmem:[%s5] sm:$0xff] %v96
  // Predicated region
  $region22: #{_forward_impl.1} parent=0 // pred_check
    _
  $region23: #{_forward_impl.1} parent=0 // pred_check_branch
    %100 = sbr.rel (0) target = $region25
  $region24: #{_forward_impl.1} parent=0 // pred_region
    _
  $region25: #{_forward_impl.1} parent=0 // pred_fallthru
    _
  // Predicated region
  $region26: #{_forward_impl.1} parent=0 // pred_check
    _
  $region27: #{_forward_impl.1} parent=0 // pred_check_branch
    %102 = sbr.rel (0) target = $region29
  $region28: #{_forward_impl.1} parent=0 // pred_region
    _
  $region29: #{_forward_impl.1} parent=0 // pred_fallthru
    _

</llo_original>
